<compile_context>
chip_gen: v7x
topology: tpu7x:2x2x1
jax: 0.10.0
libtpu: 0.0.40
codegen_flags: <defaults>
</compile_context>

<pallas_src>
import functools

import numpy as np
import jax
import jax.numpy as jnp
from jax.experimental import pallas as pl
from jax.experimental.pallas import tpu as pltpu

BN_EPS = 1e-5


# --------------------------------------------------------------------------- kernels

def _taps(x3):
    """Stack the three ky taps along the K axis.

    x3: (Bt, H, WC) bf16 -> (Bt*H, 3*WC) bf16, column blocks = [x[i-1], x[i], x[i+1]]
    (zero rows at the image borders).  kx offsets live inside the banded weights.
    """
    Bt, H, WC = x3.shape
    zrow = jnp.zeros((Bt, 1, WC), x3.dtype)
    up = jnp.concatenate([zrow, x3[:, :-1, :]], axis=1)   # row i sees x[i-1]
    dn = jnp.concatenate([x3[:, 1:, :], zrow], axis=1)    # row i sees x[i+1]
    cat = jnp.concatenate([up, x3, dn], axis=-1)          # (Bt, H, 3*WC)
    # NOTE: pltpu.roll(axis=1) + an iota row-mask would keep the shifts on the XLU,
    # but sublane rolls of packed bf16 are not uniformly supported; the concat form
    # is kept for portability.
    return cat.reshape(Bt * H, 3 * WC)


def _stats(y_flat):
    """Per-lane sum and sum-of-squares (one-pass BN partials). y_flat: (M, WCo) f32."""
    return jnp.concatenate([jnp.sum(y_flat, axis=0, keepdims=True),
                            jnp.sum(y_flat * y_flat, axis=0, keepdims=True)], axis=0)


def _conv1_res_kernel(x_ref, w_ref, wres_ref, bres_ref, y_ref, res_ref, st_ref):
    Bt, H, WCi = x_ref.shape
    x3 = x_ref[...]                                           # (Bt, H, WCi) bf16
    cat = _taps(x3)                                           # (Bt*H, 3*WCi)
    y = jnp.dot(cat, w_ref[...], preferred_element_type=jnp.float32)  # (Bt*H, WCo)
    WCo = y.shape[-1]
    y_ref[...] = y.reshape(Bt, H, WCo).astype(y_ref.dtype)    # bf16 intermediate
    st_ref[0] = _stats(y)                                     # BN1 partials (f32)
    # Residual Linear here (x already resident in VMEM) so pass 3 never re-reads x.
    res = jnp.dot(x3.reshape(Bt * H, WCi), wres_ref[...],
                  preferred_element_type=jnp.float32) + bres_ref[...]
    res_ref[...] = res.reshape(Bt, H, WCo).astype(res_ref.dtype)


def _bn1_conv2_kernel(y1_ref, sc_ref, sh_ref, w_ref, y2_ref, st_ref, *, leakiness):
    Bt, H, WCo = y1_ref.shape
    h = y1_ref[...].astype(jnp.float32) * sc_ref[...] + sh_ref[...]   # BN1 (folded)
    h = jnp.where(h >= 0, h, leakiness * h)                           # LeakyReLU
    cat = _taps(h.astype(jnp.bfloat16))                               # (Bt*H, 3*WCo)
    y = jnp.dot(cat, w_ref[...], preferred_element_type=jnp.float32)
    y2_ref[...] = y.reshape(Bt, H, WCo).astype(y2_ref.dtype)
    st_ref[0] = _stats(y)                                             # BN2 partials


def _bn2_res_kernel(y2_ref, sc_ref, sh_ref, res_ref, o_ref, *, leakiness):
    out = y2_ref[...].astype(jnp.float32) * sc_ref[...] + sh_ref[...]  # BN2 (folded)
    out = out + res_ref[...].astype(jnp.float32)                       # + residual
    o_ref[...] = jnp.where(out >= 0, out, leakiness * out).astype(o_ref.dtype)


# ---------------------------------------------------------------------- wrapper utils

def _band_conv_weights(w, W):
    """(3, 3, Cin, Cout) HWIO conv weight -> (3*W*Cin, W*Cout) fused block-banded rhs.

    Row blocks correspond to the [x[i-1], x[i], x[i+1]] tap stacking of _taps; the
    kx offsets are folded into the band.
    """
    _, _, Cin, Cout = w.shape
    j_in = np.arange(W)[None, :, None]
    j_out = np.arange(W)[None, None, :]
    kx = np.arange(3)[:, None, None]
    place = (j_in == j_out + kx - 1).astype(np.float32)          # (3, W, W)
    big = jnp.einsum("xab,yxio->yaibo", jnp.asarray(place), w)   # (3, W, Cin, W, Cout)
    return big.reshape(3 * W * Cin, W * Cout)


def _block_diag(wres, W):
    """(Cin, Cout) linear weight -> (W*Cin, W*Cout) block-diagonal (wide layout)."""
    Cin, Cout = wres.shape
    eye = jnp.eye(W, dtype=wres.dtype)
    return jnp.einsum("ab,io->aibo", eye, wres).reshape(W * Cin, W * Cout)


def _bn_fold(stats, gamma, beta, count, W):
    """Reduce per-tile (sum, sumsq) partials to folded BN scale/shift (wide layout)."""
    C = gamma.shape[-1]
    s = stats.sum(axis=0).reshape(2, W, C).sum(axis=1)           # (2, C) global sums
    mean = s[0] / count
    var = s[1] / count - mean * mean                             # biased (training BN)
    inv = jax.lax.rsqrt(var + BN_EPS)
    scale = gamma.reshape(C) * inv
    shift = beta.reshape(C) - mean * scale
    return (jnp.tile(scale.reshape(1, C), (1, W)),               # (1, W*C)
            jnp.tile(shift.reshape(1, C), (1, W)))


def _pick_batch_tile(N, H, target_rows=256):
    """Largest divisor Bt of N with Bt*H <= target_rows (MXU M-fill vs. grid steps)."""
    bt = 1
    for d in range(1, N + 1):
        if N % d == 0 and d * H <= max(target_rows, H):
            bt = d
    return bt


@functools.partial(jax.jit, static_argnames=("leakiness",))
def resnet_block(x_nchw, params, leakiness=0.0):
    """x_nchw: (N, Cin, H, W) float32 (PyTorch layout). Returns (N, Cout, H, W)."""
    N, Cin, H, W = x_nchw.shape
    Cout = params["w1"].shape[-1]
    WCi, WCo = W * Cin, W * Cout
    cnt = float(N * H * W)

    Bt = _pick_batch_tile(N, H)
    G = N // Bt

    # NCHW -> wide lane-dense layout (N, H, W*Cin), cast to bf16 once (half-width DMA).
    x = jnp.transpose(x_nchw, (0, 2, 3, 1)).reshape(N, H, WCi).astype(jnp.bfloat16)

    w1b = _band_conv_weights(params["w1"], W).astype(jnp.bfloat16)   # (3*WCi, WCo)
    w2b = _band_conv_weights(params["w2"], W).astype(jnp.bfloat16)   # (3*WCo, WCo)
    wresb = _block_diag(params["wres"], W).astype(jnp.bfloat16)      # (WCi, WCo)
    bres_w = jnp.tile(params["bres"].reshape(1, Cout), (1, W))       # (1, WCo) f32

    cp = pltpu.CompilerParams(dimension_semantics=("parallel",),
                              vmem_limit_bytes=48 * 1024 * 1024)

    def tile_spec(last):
        return pl.BlockSpec((Bt, H, last), lambda g: (g, 0, 0))

    def full_spec(shape):
        nd = len(shape)
        return pl.BlockSpec(shape, lambda g, _nd=nd: (0,) * _nd)

    stat_spec = pl.BlockSpec((1, 2, WCo), lambda g: (g, 0, 0))

    # ---- pass 1: conv1 + residual Linear + BN1 partial stats -----------------------
    y1, res, st1 = pl.pallas_call(
        _conv1_res_kernel,
        grid=(G,),
        in_specs=[tile_spec(WCi), full_spec(w1b.shape),
                  full_spec(wresb.shape), full_spec(bres_w.shape)],
        out_specs=[tile_spec(WCo), tile_spec(WCo), stat_spec],
        out_shape=[jax.ShapeDtypeStruct((N, H, WCo), jnp.bfloat16),
                   jax.ShapeDtypeStruct((N, H, WCo), jnp.bfloat16),
                   jax.ShapeDtypeStruct((G, 2, WCo), jnp.float32)],
        compiler_params=cp,
    )(x, w1b, wresb, bres_w)

    sc1, sh1 = _bn_fold(st1, params["g1"], params["b1"], cnt, W)     # tiny reduce

    # ---- pass 2: BN1 + LeakyReLU + conv2 + BN2 partial stats -----------------------
    y2, st2 = pl.pallas_call(
        functools.partial(_bn1_conv2_kernel, leakiness=leakiness),
        grid=(G,),
        in_specs=[tile_spec(WCo), full_spec((1, WCo)), full_spec((1, WCo)),
                  full_spec(w2b.shape)],
        out_specs=[tile_spec(WCo), stat_spec],
        out_shape=[jax.ShapeDtypeStruct((N, H, WCo), jnp.bfloat16),
                   jax.ShapeDtypeStruct((G, 2, WCo), jnp.float32)],
        compiler_params=cp,
    )(y1, sc1, sh1, w2b)

    sc2, sh2 = _bn_fold(st2, params["g2"], params["b2"], cnt, W)

    # ---- pass 3: BN2 + residual add + LeakyReLU (lane-dense f32 output) ------------
    out = pl.pallas_call(
        functools.partial(_bn2_res_kernel, leakiness=leakiness),
        grid=(G,),
        in_specs=[tile_spec(WCo), full_spec((1, WCo)), full_spec((1, WCo)),
                  tile_spec(WCo)],
        out_specs=tile_spec(WCo),
        out_shape=jax.ShapeDtypeStruct((N, H, WCo), jnp.float32),
        compiler_params=cp,
    )(y2, sc2, sh2, res)

    return jnp.transpose(out.reshape(N, H, W, Cout), (0, 3, 1, 2))   # -> NCHW


# -------------------------------------------------------------------------- reference

def init_params(key, cin, cout):
    ks = jax.random.split(key, 8)
    return {
        "w1":   0.1 * jax.random.normal(ks[0], (3, 3, cin, cout), jnp.float32),
        "w2":   0.1 * jax.random.normal(ks[1], (3, 3, cout, cout), jnp.float32),
        "wres": 0.1 * jax.random.normal(ks[2], (cin, cout), jnp.float32),
        "bres": 0.1 * jax.random.normal(ks[3], (1, cout), jnp.float32),
        "g1":   1.0 + 0.1 * jax.random.normal(ks[4], (1, cout), jnp.float32),
        "b1":   0.1 * jax.random.normal(ks[5], (1, cout), jnp.float32),
        "g2":   1.0 + 0.1 * jax.random.normal(ks[6], (1, cout), jnp.float32),
        "b2":   0.1 * jax.random.normal(ks[7], (1, cout), jnp.float32),
    }


def reference(x_nchw, params, leakiness=0.0):
    """Pure-JAX dense reference of the same forward pass (f32, HIGHEST precision)."""
    x = jnp.transpose(x_nchw, (0, 2, 3, 1))

    def conv(y, w):
        return jax.lax.conv_general_dilated(
            y, w, window_strides=(1, 1), padding="SAME",
            dimension_numbers=("NHWC", "HWIO", "NHWC"),
            precision=jax.lax.Precision.HIGHEST)

    def bn(y, g, b):
        mean = jnp.mean(y, axis=(0, 1, 2), keepdims=True)
        var = jnp.mean((y - mean) ** 2, axis=(0, 1, 2), keepdims=True)
        return ((y - mean) * jax.lax.rsqrt(var + BN_EPS)
                * g.reshape(1, 1, 1, -1) + b.reshape(1, 1, 1, -1))

    def lrelu(y):
        return jnp.where(y >= 0, y, leakiness * y)

    out = lrelu(bn(conv(x, params["w1"]), params["g1"], params["b1"]))
    out = bn(conv(out, params["w2"]), params["g2"], params["b2"])
    res = jnp.einsum("nhwc,cd->nhwd", x, params["wres"],
                     precision=jax.lax.Precision.HIGHEST) \
        + params["bres"].reshape(1, 1, 1, -1)
    out = lrelu(out + res)
    return jnp.transpose(out, (0, 3, 1, 2))


if __name__ == "__main__":
    key = jax.random.PRNGKey(0)
    kx, kp = jax.random.split(key)

    N, Cin, Cout, H, W = 2, 4, 8, 16, 16
    x = jax.random.normal(kx, (N, Cin, H, W), jnp.float32)   # NCHW, like PyTorch
    params = init_params(kp, Cin, Cout)

    out = resnet_block(x, params, leakiness=0.0)
    out = jax.block_until_ready(out)

    assert out.shape == (N, Cout, H, W)
    ref = reference(x, params, leakiness=0.0)
    err = float(jnp.max(jnp.abs(out - ref)))
    assert jnp.all(jnp.isfinite(out)) and err < 5e-2, f"max abs err {err}"

    print("KERNEL_OK")
</pallas_src>

<mosaic_0001>
module attributes {stable_mosaic.version = 11 : i64} {
  func.func @_conv1_res_kernel(%arg0: i32, %arg1: memref<2x16x64xbf16, #tpu.memory_space<vmem>>, %arg2: memref<192x128xbf16, #tpu.memory_space<vmem>>, %arg3: memref<64x128xbf16, #tpu.memory_space<vmem>>, %arg4: memref<1x128xf32, #tpu.memory_space<vmem>>, %arg5: memref<2x16x128xbf16, #tpu.memory_space<vmem>>, %arg6: memref<2x16x128xbf16, #tpu.memory_space<vmem>>, %arg7: memref<1x2x128xf32, #tpu.memory_space<vmem>>) attributes {dimension_semantics = [#tpu.dimension_semantics<parallel>], iteration_bounds = array<i64: 1>, scalar_prefetch = 0 : i64, scratch_operands = 0 : i64, tpu.core_type = #tpu.core_type<tc>, window_params = [{transform_indices = @transform_0, window_bounds = array<i64: 2, 16, 64>}, {pipeline_mode = #tpu.pipeline_mode<synchronous>, transform_indices = @transform_1, window_bounds = array<i64: 192, 128>}, {pipeline_mode = #tpu.pipeline_mode<synchronous>, transform_indices = @transform_2, window_bounds = array<i64: 64, 128>}, {pipeline_mode = #tpu.pipeline_mode<synchronous>, transform_indices = @transform_3, window_bounds = array<i64: 1, 128>}, {transform_indices = @transform_4, window_bounds = array<i64: 2, 16, 128>}, {transform_indices = @transform_5, window_bounds = array<i64: 2, 16, 128>}, {transform_indices = @transform_6, window_bounds = array<i64: 1, 2, 128>}]} {
    %c0 = arith.constant 0 : index
    %c0_0 = arith.constant 0 : index
    %c0_1 = arith.constant 0 : index
    %0 = vector.load %arg1[%c0, %c0_0, %c0_1] : memref<2x16x64xbf16, #tpu.memory_space<vmem>>, vector<2x16x64xbf16>
    %cst = arith.constant 0.000000e+00 : bf16
    %1 = vector.broadcast %cst : bf16 to vector<2x1x64xbf16>
    %2 = vector.extract_strided_slice %0 {offsets = [0, 0, 0], sizes = [2, 15, 64], strides = [1, 1, 1]} : vector<2x16x64xbf16> to vector<2x15x64xbf16>
    %3 = tpu.concatenate %1, %2 in 1 : vector<2x1x64xbf16>, vector<2x15x64xbf16> -> vector<2x16x64xbf16>
    %4 = vector.extract_strided_slice %0 {offsets = [0, 1, 0], sizes = [2, 15, 64], strides = [1, 1, 1]} : vector<2x16x64xbf16> to vector<2x15x64xbf16>
    %5 = tpu.concatenate %4, %1 in 1 : vector<2x15x64xbf16>, vector<2x1x64xbf16> -> vector<2x16x64xbf16>
    %6 = tpu.concatenate %3, %0, %5 in 2 : vector<2x16x64xbf16>, vector<2x16x64xbf16>, vector<2x16x64xbf16> -> vector<2x16x192xbf16>
    %7 = vector.shape_cast %6 : vector<2x16x192xbf16> to vector<32x192xbf16>
    %c0_2 = arith.constant 0 : index
    %c0_3 = arith.constant 0 : index
    %8 = vector.load %arg2[%c0_2, %c0_3] : memref<192x128xbf16, #tpu.memory_space<vmem>>, vector<192x128xbf16>
    %cst_4 = arith.constant dense<0.000000e+00> : vector<32x128xf32>
    %9 = tpu.matmul %7, %8, %cst_4 {dimension_numbers = #tpu.dot_dimension_numbers<[1], [0], [0], [1], [0, 0, 1, 1], [], []>} : vector<32x192xbf16>, vector<192x128xbf16>, vector<32x128xf32> -> vector<32x128xf32>
    %10 = vector.shape_cast %9 : vector<32x128xf32> to vector<2x16x128xf32>
    %11 = arith.truncf %10 : vector<2x16x128xf32> to vector<2x16x128xbf16>
    %c0_5 = arith.constant 0 : index
    %c0_6 = arith.constant 0 : index
    %c0_7 = arith.constant 0 : index
    %12 = vector.load %arg5[%c0_5, %c0_6, %c0_7] : memref<2x16x128xbf16, #tpu.memory_space<vmem>>, vector<2x16x128xbf16>
    tpu.vector_store %arg5[%c0_5, %c0_6, %c0_7], %11 {strides = array<i32>} : memref<2x16x128xbf16, #tpu.memory_space<vmem>>, vector<2x16x128xbf16>,
    %cst_8 = arith.constant dense<0.000000e+00> : vector<128xf32>
    %13 = vector.multi_reduction <add>, %9, %cst_8 [0] : vector<32x128xf32> to vector<128xf32>
    %14 = vector.shape_cast %13 : vector<128xf32> to vector<1x128xf32>
    %15 = arith.mulf %9, %9 : vector<32x128xf32>
    %cst_9 = arith.constant dense<0.000000e+00> : vector<128xf32>
    %16 = vector.multi_reduction <add>, %15, %cst_9 [0] : vector<32x128xf32> to vector<128xf32>
    %17 = vector.shape_cast %16 : vector<128xf32> to vector<1x128xf32>
    %18 = tpu.concatenate %14, %17 in 0 : vector<1x128xf32>, vector<1x128xf32> -> vector<2x128xf32>
    %c0_10 = arith.constant 0 : index
    %c0_11 = arith.constant 0 : index
    %c0_12 = arith.constant 0 : index
    %19 = vector.load %arg7[%c0_10, %c0_11, %c0_12] : memref<1x2x128xf32, #tpu.memory_space<vmem>>, vector<1x2x128xf32>
    %20 = vector.shape_cast %19 : vector<1x2x128xf32> to vector<2x128xf32>
    %21 = vector.shape_cast %18 : vector<2x128xf32> to vector<1x2x128xf32>
    tpu.vector_store %arg7[%c0_10, %c0_11, %c0_12], %21 {strides = array<i32>} : memref<1x2x128xf32, #tpu.memory_space<vmem>>, vector<1x2x128xf32>,
    %22 = vector.shape_cast %0 : vector<2x16x64xbf16> to vector<32x64xbf16>
    %c0_13 = arith.constant 0 : index
    %c0_14 = arith.constant 0 : index
    %23 = vector.load %arg3[%c0_13, %c0_14] : memref<64x128xbf16, #tpu.memory_space<vmem>>, vector<64x128xbf16>
    %cst_15 = arith.constant dense<0.000000e+00> : vector<32x128xf32>
    %24 = tpu.matmul %22, %23, %cst_15 {dimension_numbers = #tpu.dot_dimension_numbers<[1], [0], [0], [1], [0, 0, 1, 1], [], []>} : vector<32x64xbf16>, vector<64x128xbf16>, vector<32x128xf32> -> vector<32x128xf32>
    %c0_16 = arith.constant 0 : index
    %c0_17 = arith.constant 0 : index
    %25 = vector.load %arg4[%c0_16, %c0_17] : memref<1x128xf32, #tpu.memory_space<vmem>>, vector<1x128xf32>
    %26 = vector.broadcast %25 : vector<1x128xf32> to vector<32x128xf32>
    %27 = arith.addf %24, %26 : vector<32x128xf32>
    %28 = vector.shape_cast %27 : vector<32x128xf32> to vector<2x16x128xf32>
    %29 = arith.truncf %28 : vector<2x16x128xf32> to vector<2x16x128xbf16>
    %c0_18 = arith.constant 0 : index
    %c0_19 = arith.constant 0 : index
    %c0_20 = arith.constant 0 : index
    %30 = vector.load %arg6[%c0_18, %c0_19, %c0_20] : memref<2x16x128xbf16, #tpu.memory_space<vmem>>, vector<2x16x128xbf16>
    tpu.vector_store %arg6[%c0_18, %c0_19, %c0_20], %29 {strides = array<i32>} : memref<2x16x128xbf16, #tpu.memory_space<vmem>>, vector<2x16x128xbf16>,
    return
  }
  func.func @transform_0(%arg0: i32) -> (i32, i32, i32) {
    %c0_i32 = arith.constant 0 : i32
    %c0_i32_0 = arith.constant 0 : i32
    %c0_i32_1 = arith.constant 0 : i32
    return %arg0, %c0_i32, %c0_i32_0 : i32, i32, i32
  }
  func.func @transform_1(%arg0: i32) -> (i32, i32) {
    %c0_i32 = arith.constant 0 : i32
    %c0_i32_0 = arith.constant 0 : i32
    %c0_i32_1 = arith.constant 0 : i32
    return %c0_i32, %c0_i32_0 : i32, i32
  }
  func.func @transform_2(%arg0: i32) -> (i32, i32) {
    %c0_i32 = arith.constant 0 : i32
    %c0_i32_0 = arith.constant 0 : i32
    %c0_i32_1 = arith.constant 0 : i32
    return %c0_i32, %c0_i32_0 : i32, i32
  }
  func.func @transform_3(%arg0: i32) -> (i32, i32) {
    %c0_i32 = arith.constant 0 : i32
    %c0_i32_0 = arith.constant 0 : i32
    %c0_i32_1 = arith.constant 0 : i32
    return %c0_i32, %c0_i32_0 : i32, i32
  }
  func.func @transform_4(%arg0: i32) -> (i32, i32, i32) {
    %c0_i32 = arith.constant 0 : i32
    %c0_i32_0 = arith.constant 0 : i32
    %c0_i32_1 = arith.constant 0 : i32
    return %arg0, %c0_i32, %c0_i32_0 : i32, i32, i32
  }
  func.func @transform_5(%arg0: i32) -> (i32, i32, i32) {
    %c0_i32 = arith.constant 0 : i32
    %c0_i32_0 = arith.constant 0 : i32
    %c0_i32_1 = arith.constant 0 : i32
    return %arg0, %c0_i32, %c0_i32_0 : i32, i32, i32
  }
  func.func @transform_6(%arg0: i32) -> (i32, i32, i32) {
    %c0_i32 = arith.constant 0 : i32
    %c0_i32_0 = arith.constant 0 : i32
    %c0_i32_1 = arith.constant 0 : i32
    return %arg0, %c0_i32, %c0_i32_0 : i32, i32, i32
  }
}

module attributes {stable_mosaic.version = 11 : i64} {
  func.func @_bn1_conv2_kernel(%arg0: i32, %arg1: memref<2x16x128xbf16, #tpu.memory_space<vmem>>, %arg2: memref<1x128xf32, #tpu.memory_space<vmem>>, %arg3: memref<1x128xf32, #tpu.memory_space<vmem>>, %arg4: memref<384x128xbf16, #tpu.memory_space<vmem>>, %arg5: memref<2x16x128xbf16, #tpu.memory_space<vmem>>, %arg6: memref<1x2x128xf32, #tpu.memory_space<vmem>>) attributes {dimension_semantics = [#tpu.dimension_semantics<parallel>], iteration_bounds = array<i64: 1>, scalar_prefetch = 0 : i64, scratch_operands = 0 : i64, tpu.core_type = #tpu.core_type<tc>, window_params = [{transform_indices = @transform_0, window_bounds = array<i64: 2, 16, 128>}, {pipeline_mode = #tpu.pipeline_mode<synchronous>, transform_indices = @transform_1, window_bounds = array<i64: 1, 128>}, {pipeline_mode = #tpu.pipeline_mode<synchronous>, transform_indices = @transform_2, window_bounds = array<i64: 1, 128>}, {pipeline_mode = #tpu.pipeline_mode<synchronous>, transform_indices = @transform_3, window_bounds = array<i64: 384, 128>}, {transform_indices = @transform_4, window_bounds = array<i64: 2, 16, 128>}, {transform_indices = @transform_5, window_bounds = array<i64: 1, 2, 128>}]} {
    %c0 = arith.constant 0 : index
    %c0_0 = arith.constant 0 : index
    %c0_1 = arith.constant 0 : index
    %0 = vector.load %arg1[%c0, %c0_0, %c0_1] : memref<2x16x128xbf16, #tpu.memory_space<vmem>>, vector<2x16x128xbf16>
    %1 = arith.extf %0 : vector<2x16x128xbf16> to vector<2x16x128xf32>
    %c0_2 = arith.constant 0 : index
    %c0_3 = arith.constant 0 : index
    %2 = vector.load %arg2[%c0_2, %c0_3] : memref<1x128xf32, #tpu.memory_space<vmem>>, vector<1x128xf32>
    %3 = vector.shape_cast %2 : vector<1x128xf32> to vector<1x1x128xf32>
    %4 = vector.broadcast %3 : vector<1x1x128xf32> to vector<2x16x128xf32>
    %5 = arith.mulf %1, %4 : vector<2x16x128xf32>
    %c0_4 = arith.constant 0 : index
    %c0_5 = arith.constant 0 : index
    %6 = vector.load %arg3[%c0_4, %c0_5] : memref<1x128xf32, #tpu.memory_space<vmem>>, vector<1x128xf32>
    %7 = vector.shape_cast %6 : vector<1x128xf32> to vector<1x1x128xf32>
    %8 = vector.broadcast %7 : vector<1x1x128xf32> to vector<2x16x128xf32>
    %9 = arith.addf %5, %8 : vector<2x16x128xf32>
    %cst = arith.constant 0.000000e+00 : f32
    %10 = vector.broadcast %cst : f32 to vector<2x16x128xf32>
    %11 = arith.cmpf oge, %9, %10 : vector<2x16x128xf32>
    %cst_6 = arith.constant 0.000000e+00 : f32
    %12 = vector.broadcast %cst_6 : f32 to vector<2x16x128xf32>
    %13 = arith.mulf %12, %9 : vector<2x16x128xf32>
    %14 = arith.select %11, %9, %13 : vector<2x16x128xi1>, vector<2x16x128xf32>
    %15 = arith.truncf %14 : vector<2x16x128xf32> to vector<2x16x128xbf16>
    %cst_7 = arith.constant 0.000000e+00 : bf16
    %16 = vector.broadcast %cst_7 : bf16 to vector<2x1x128xbf16>
    %17 = vector.extract_strided_slice %15 {offsets = [0, 0, 0], sizes = [2, 15, 128], strides = [1, 1, 1]} : vector<2x16x128xbf16> to vector<2x15x128xbf16>
    %18 = tpu.concatenate %16, %17 in 1 : vector<2x1x128xbf16>, vector<2x15x128xbf16> -> vector<2x16x128xbf16>
    %19 = vector.extract_strided_slice %15 {offsets = [0, 1, 0], sizes = [2, 15, 128], strides = [1, 1, 1]} : vector<2x16x128xbf16> to vector<2x15x128xbf16>
    %20 = tpu.concatenate %19, %16 in 1 : vector<2x15x128xbf16>, vector<2x1x128xbf16> -> vector<2x16x128xbf16>
    %21 = tpu.concatenate %18, %15, %20 in 2 : vector<2x16x128xbf16>, vector<2x16x128xbf16>, vector<2x16x128xbf16> -> vector<2x16x384xbf16>
    %22 = vector.shape_cast %21 : vector<2x16x384xbf16> to vector<32x384xbf16>
    %c0_8 = arith.constant 0 : index
    %c0_9 = arith.constant 0 : index
    %23 = vector.load %arg4[%c0_8, %c0_9] : memref<384x128xbf16, #tpu.memory_space<vmem>>, vector<384x128xbf16>
    %cst_10 = arith.constant dense<0.000000e+00> : vector<32x128xf32>
    %24 = tpu.matmul %22, %23, %cst_10 {dimension_numbers = #tpu.dot_dimension_numbers<[1], [0], [0], [1], [0, 0, 1, 1], [], []>} : vector<32x384xbf16>, vector<384x128xbf16>, vector<32x128xf32> -> vector<32x128xf32>
    %25 = vector.shape_cast %24 : vector<32x128xf32> to vector<2x16x128xf32>
    %26 = arith.truncf %25 : vector<2x16x128xf32> to vector<2x16x128xbf16>
    %c0_11 = arith.constant 0 : index
    %c0_12 = arith.constant 0 : index
    %c0_13 = arith.constant 0 : index
    %27 = vector.load %arg5[%c0_11, %c0_12, %c0_13] : memref<2x16x128xbf16, #tpu.memory_space<vmem>>, vector<2x16x128xbf16>
    tpu.vector_store %arg5[%c0_11, %c0_12, %c0_13], %26 {strides = array<i32>} : memref<2x16x128xbf16, #tpu.memory_space<vmem>>, vector<2x16x128xbf16>,
    %cst_14 = arith.constant dense<0.000000e+00> : vector<128xf32>
    %28 = vector.multi_reduction <add>, %24, %cst_14 [0] : vector<32x128xf32> to vector<128xf32>
    %29 = vector.shape_cast %28 : vector<128xf32> to vector<1x128xf32>
    %30 = arith.mulf %24, %24 : vector<32x128xf32>
    %cst_15 = arith.constant dense<0.000000e+00> : vector<128xf32>
    %31 = vector.multi_reduction <add>, %30, %cst_15 [0] : vector<32x128xf32> to vector<128xf32>
    %32 = vector.shape_cast %31 : vector<128xf32> to vector<1x128xf32>
    %33 = tpu.concatenate %29, %32 in 0 : vector<1x128xf32>, vector<1x128xf32> -> vector<2x128xf32>
    %c0_16 = arith.constant 0 : index
    %c0_17 = arith.constant 0 : index
    %c0_18 = arith.constant 0 : index
    %34 = vector.load %arg6[%c0_16, %c0_17, %c0_18] : memref<1x2x128xf32, #tpu.memory_space<vmem>>, vector<1x2x128xf32>
    %35 = vector.shape_cast %34 : vector<1x2x128xf32> to vector<2x128xf32>
    %36 = vector.shape_cast %33 : vector<2x128xf32> to vector<1x2x128xf32>
    tpu.vector_store %arg6[%c0_16, %c0_17, %c0_18], %36 {strides = array<i32>} : memref<1x2x128xf32, #tpu.memory_space<vmem>>, vector<1x2x128xf32>,
    return
  }
  func.func @transform_0(%arg0: i32) -> (i32, i32, i32) {
    %c0_i32 = arith.constant 0 : i32
    %c0_i32_0 = arith.constant 0 : i32
    %c0_i32_1 = arith.constant 0 : i32
    return %arg0, %c0_i32, %c0_i32_0 : i32, i32, i32
  }
  func.func @transform_1(%arg0: i32) -> (i32, i32) {
    %c0_i32 = arith.constant 0 : i32
    %c0_i32_0 = arith.constant 0 : i32
    %c0_i32_1 = arith.constant 0 : i32
    return %c0_i32, %c0_i32_0 : i32, i32
  }
  func.func @transform_2(%arg0: i32) -> (i32, i32) {
    %c0_i32 = arith.constant 0 : i32
    %c0_i32_0 = arith.constant 0 : i32
    %c0_i32_1 = arith.constant 0 : i32
    return %c0_i32, %c0_i32_0 : i32, i32
  }
  func.func @transform_3(%arg0: i32) -> (i32, i32) {
    %c0_i32 = arith.constant 0 : i32
    %c0_i32_0 = arith.constant 0 : i32
    %c0_i32_1 = arith.constant 0 : i32
    return %c0_i32, %c0_i32_0 : i32, i32
  }
  func.func @transform_4(%arg0: i32) -> (i32, i32, i32) {
    %c0_i32 = arith.constant 0 : i32
    %c0_i32_0 = arith.constant 0 : i32
    %c0_i32_1 = arith.constant 0 : i32
    return %arg0, %c0_i32, %c0_i32_0 : i32, i32, i32
  }
  func.func @transform_5(%arg0: i32) -> (i32, i32, i32) {
    %c0_i32 = arith.constant 0 : i32
    %c0_i32_0 = arith.constant 0 : i32
    %c0_i32_1 = arith.constant 0 : i32
    return %arg0, %c0_i32, %c0_i32_0 : i32, i32, i32
  }
}

module attributes {stable_mosaic.version = 11 : i64} {
  func.func @_bn2_res_kernel(%arg0: i32, %arg1: memref<2x16x128xbf16, #tpu.memory_space<vmem>>, %arg2: memref<1x128xf32, #tpu.memory_space<vmem>>, %arg3: memref<1x128xf32, #tpu.memory_space<vmem>>, %arg4: memref<2x16x128xbf16, #tpu.memory_space<vmem>>, %arg5: memref<2x16x128xf32, #tpu.memory_space<vmem>>) attributes {dimension_semantics = [#tpu.dimension_semantics<parallel>], iteration_bounds = array<i64: 1>, scalar_prefetch = 0 : i64, scratch_operands = 0 : i64, tpu.core_type = #tpu.core_type<tc>, window_params = [{transform_indices = @transform_0, window_bounds = array<i64: 2, 16, 128>}, {pipeline_mode = #tpu.pipeline_mode<synchronous>, transform_indices = @transform_1, window_bounds = array<i64: 1, 128>}, {pipeline_mode = #tpu.pipeline_mode<synchronous>, transform_indices = @transform_2, window_bounds = array<i64: 1, 128>}, {transform_indices = @transform_3, window_bounds = array<i64: 2, 16, 128>}, {transform_indices = @transform_4, window_bounds = array<i64: 2, 16, 128>}]} {
    %c0 = arith.constant 0 : index
    %c0_0 = arith.constant 0 : index
    %c0_1 = arith.constant 0 : index
    %0 = vector.load %arg1[%c0, %c0_0, %c0_1] : memref<2x16x128xbf16, #tpu.memory_space<vmem>>, vector<2x16x128xbf16>
    %1 = arith.extf %0 : vector<2x16x128xbf16> to vector<2x16x128xf32>
    %c0_2 = arith.constant 0 : index
    %c0_3 = arith.constant 0 : index
    %2 = vector.load %arg2[%c0_2, %c0_3] : memref<1x128xf32, #tpu.memory_space<vmem>>, vector<1x128xf32>
    %3 = vector.shape_cast %2 : vector<1x128xf32> to vector<1x1x128xf32>
    %4 = vector.broadcast %3 : vector<1x1x128xf32> to vector<2x16x128xf32>
    %5 = arith.mulf %1, %4 : vector<2x16x128xf32>
    %c0_4 = arith.constant 0 : index
    %c0_5 = arith.constant 0 : index
    %6 = vector.load %arg3[%c0_4, %c0_5] : memref<1x128xf32, #tpu.memory_space<vmem>>, vector<1x128xf32>
    %7 = vector.shape_cast %6 : vector<1x128xf32> to vector<1x1x128xf32>
    %8 = vector.broadcast %7 : vector<1x1x128xf32> to vector<2x16x128xf32>
    %9 = arith.addf %5, %8 : vector<2x16x128xf32>
    %c0_6 = arith.constant 0 : index
    %c0_7 = arith.constant 0 : index
    %c0_8 = arith.constant 0 : index
    %10 = vector.load %arg4[%c0_6, %c0_7, %c0_8] : memref<2x16x128xbf16, #tpu.memory_space<vmem>>, vector<2x16x128xbf16>
    %11 = arith.extf %10 : vector<2x16x128xbf16> to vector<2x16x128xf32>
    %12 = arith.addf %9, %11 : vector<2x16x128xf32>
    %cst = arith.constant 0.000000e+00 : f32
    %13 = vector.broadcast %cst : f32 to vector<2x16x128xf32>
    %14 = arith.cmpf oge, %12, %13 : vector<2x16x128xf32>
    %cst_9 = arith.constant 0.000000e+00 : f32
    %15 = vector.broadcast %cst_9 : f32 to vector<2x16x128xf32>
    %16 = arith.mulf %15, %12 : vector<2x16x128xf32>
    %17 = arith.select %14, %12, %16 : vector<2x16x128xi1>, vector<2x16x128xf32>
    %c0_10 = arith.constant 0 : index
    %c0_11 = arith.constant 0 : index
    %c0_12 = arith.constant 0 : index
    %18 = vector.load %arg5[%c0_10, %c0_11, %c0_12] : memref<2x16x128xf32, #tpu.memory_space<vmem>>, vector<2x16x128xf32>
    tpu.vector_store %arg5[%c0_10, %c0_11, %c0_12], %17 {strides = array<i32>} : memref<2x16x128xf32, #tpu.memory_space<vmem>>, vector<2x16x128xf32>,
    return
  }
  func.func @transform_0(%arg0: i32) -> (i32, i32, i32) {
    %c0_i32 = arith.constant 0 : i32
    %c0_i32_0 = arith.constant 0 : i32
    %c0_i32_1 = arith.constant 0 : i32
    return %arg0, %c0_i32, %c0_i32_0 : i32, i32, i32
  }
  func.func @transform_1(%arg0: i32) -> (i32, i32) {
    %c0_i32 = arith.constant 0 : i32
    %c0_i32_0 = arith.constant 0 : i32
    %c0_i32_1 = arith.constant 0 : i32
    return %c0_i32, %c0_i32_0 : i32, i32
  }
  func.func @transform_2(%arg0: i32) -> (i32, i32) {
    %c0_i32 = arith.constant 0 : i32
    %c0_i32_0 = arith.constant 0 : i32
    %c0_i32_1 = arith.constant 0 : i32
    return %c0_i32, %c0_i32_0 : i32, i32
  }
  func.func @transform_3(%arg0: i32) -> (i32, i32, i32) {
    %c0_i32 = arith.constant 0 : i32
    %c0_i32_0 = arith.constant 0 : i32
    %c0_i32_1 = arith.constant 0 : i32
    return %arg0, %c0_i32, %c0_i32_0 : i32, i32, i32
  }
  func.func @transform_4(%arg0: i32) -> (i32, i32, i32) {
    %c0_i32 = arith.constant 0 : i32
    %c0_i32_0 = arith.constant 0 : i32
    %c0_i32_1 = arith.constant 0 : i32
    return %arg0, %c0_i32, %c0_i32_0 : i32, i32, i32
  }
}

</mosaic_0001>

<llo_original>
// kernel: resnet_block.3
$region0: #{resnet_block.3}
  #allocation0 [shape = 'u32[]', space=smem, size = 0x4, offset = 0x4, fixed_abs, tag = 'smem constant byte address 0x4 - core index']
  #allocation1 [shape = 'u32[144,128]{1,0:T(1,128)}', space=vmem, size = 0x12000, scoped, tag = 'internal scratch']
  %s0 = inlined_call_operand.vmem [shape: bf16[2,16,64], index: 0, kind: input, shape index: {}]
  %s1 = inlined_call_operand.vmem [shape: bf16[192,128], index: 1, kind: input, shape index: {}]
  %s2 = inlined_call_operand.vmem [shape: bf16[64,128], index: 2, kind: input, shape index: {}]
  %s3 = inlined_call_operand.vmem [shape: f32[1,128], index: 3, kind: input, shape index: {}]
  %s4 = inlined_call_operand.vmem [shape: bf16[2,16,128], index: 4, kind: output, shape index: {0}]
  %s5 = inlined_call_operand.vmem [shape: bf16[2,16,128], index: 5, kind: output, shape index: {1}]
  %s6 = inlined_call_operand.vmem [shape: f32[1,2,128], index: 6, kind: output, shape index: {2}]
  %7 = xla_tuple %s4, %s5, %s6
  %s8 = sld [smem:[#allocation0]]
  $region42: #{resnet_block.3} parent=0
    _
  %s10 = ssub.s32 1, %s8
  %s11 = scalar_select 0, %s10, %s8
  // Predicated region
  $region2: #{resnet_block.3} parent=0 // pred_check
    _
  $region3: #{resnet_block.3} parent=0 // pred_check_branch
    %13 = sbr.rel (0) target = $region5
  $region4: #{resnet_block.3} parent=0 // pred_region
    _
  $region5: #{resnet_block.3} parent=0 // pred_fallthru
    _
  // Predicated region
  $region6: #{resnet_block.3} parent=0 // pred_check
    _
  $region7: #{resnet_block.3} parent=0 // pred_check_branch
    %15 = sbr.rel (0) target = $region9
  $region8: #{resnet_block.3} parent=0 // pred_region
    _
  $region9: #{resnet_block.3} parent=0 // pred_fallthru
    _
  // Predicated region
  $region10: #{resnet_block.3} parent=0 // pred_check
    _
  $region11: #{resnet_block.3} parent=0 // pred_check_branch
    %17 = sbr.rel (0) target = $region13
  $region12: #{resnet_block.3} parent=0 // pred_region
    _
  $region13: #{resnet_block.3} parent=0 // pred_fallthru
    _
  // Predicated region
  $region14: #{resnet_block.3} parent=0 // pred_check
    _
  $region15: #{resnet_block.3} parent=0 // pred_check_branch
    %19 = sbr.rel (0) target = $region17
  $region16: #{resnet_block.3} parent=0 // pred_region
    _
  $region17: #{resnet_block.3} parent=0 // pred_fallthru
    _
  %v21 = vld [vmem:[%s0] sm:$0xf]
  %v22 = vld [vmem:[%s0 + $0x4] sm:$0xf]
  %v23 = vld [vmem:[%s0 + $0x8] sm:$0xf]
  %v24 = vld [vmem:[%s0 + $0xc] sm:$0xf]
  %v29 = vunpack.c.l.b16 %v21
  %v30 = vunpack.c.l.b16 %v22
  %v31 = vunpack.c.l.b16 %v23
  %v32 = vunpack.c.l.b16 %v24
  %v33 = vpack.c.b16 %v30, %v29
  %v34 = vpack.c.b16 %v32, %v31
  %v36 = vshrl.u32 %v33, 16
  %v38 = vrot.slane %v36, 7
  %v39 = vshll.u32 %v33, 16
  %v41 = vor.u32 %v38, %v39
  %v43 = vshrl.u32 %v34, 16
  %v45 = vrot.slane %v43, 7
  %v46 = vshll.u32 %v34, 16
  %v48 = vor.u32 %v45, %v46
  %vm51 = vcmask 1040384
  %vm52 = vsmask.f32 256
  %vm53 = vmand %vm51, %vm52
  %v54 = vsel %vm53, 0, %v41
  %v55 = vsel %vm53, 0, %v48
  %v56 = vrot.slane %v39, 1
  %v57 = vor.u32 %v36, %v56
  %v58 = vrot.slane %v46, 1
  %v59 = vor.u32 %v43, %v58
  %vm62 = vcmask 1047552
  %vm63 = vsmask.f32 7424
  %vm64 = vmand %vm62, %vm63
  %v65 = vsel %vm64, %v57, 0
  %v66 = vsel %vm64, %v59, 0
  %67 = vrot.lane.b32.xlu0 %v33, 64
  %v68 = vpop.permute.xlu0 %67
  %69 = vrot.lane.b32.xlu0 %v34, 64
  %v70 = vpop.permute.xlu0 %69
  %vm71 = vcmask 523264
  %v74 = vsel %vm71, %v54, %v68
  %v78 = vsel %vm71, %v55, %v70
  %v80 = vld [vmem:[%s1] sm:$0xf]
  %v81 = vld [vmem:[%s1 + $0x4] sm:$0xf]
  %v82 = vld [vmem:[%s1 + $0x8] sm:$0xf]
  %v83 = vld [vmem:[%s1 + $0xc] sm:$0xf]
  %v84 = vld [vmem:[%s1 + $0x10] sm:$0xf]
  %v85 = vld [vmem:[%s1 + $0x14] sm:$0xf]
  %v86 = vld [vmem:[%s1 + $0x18] sm:$0xf]
  %v87 = vld [vmem:[%s1 + $0x1c] sm:$0xf]
  %v88 = vld [vmem:[%s1 + $0x20] sm:$0xf]
  %v89 = vld [vmem:[%s1 + $0x24] sm:$0xf]
  %v90 = vld [vmem:[%s1 + $0x28] sm:$0xf]
  %v91 = vld [vmem:[%s1 + $0x2c] sm:$0xf]
  %v92 = vld [vmem:[%s1 + $0x30] sm:$0xf]
  %v93 = vld [vmem:[%s1 + $0x34] sm:$0xf]
  %v94 = vld [vmem:[%s1 + $0x38] sm:$0xf]
  %v95 = vld [vmem:[%s1 + $0x3c] sm:$0xf]
  %v96 = vld [vmem:[%s1 + $0x40] sm:$0xf]
  %v97 = vld [vmem:[%s1 + $0x44] sm:$0xf]
  %v98 = vld [vmem:[%s1 + $0x48] sm:$0xf]
  %v99 = vld [vmem:[%s1 + $0x4c] sm:$0xf]
  %v100 = vld [vmem:[%s1 + $0x50] sm:$0xf]
  %v101 = vld [vmem:[%s1 + $0x54] sm:$0xf]
  %v102 = vld [vmem:[%s1 + $0x58] sm:$0xf]
  %v103 = vld [vmem:[%s1 + $0x5c] sm:$0xf]
  %v128 = vunpack.c.l.b16 %v80
  %v129 = vunpack.c.l.b16 %v81
  %v130 = vunpack.c.l.b16 %v82
  %v131 = vunpack.c.l.b16 %v83
  %v132 = vunpack.c.l.b16 %v84
  %v133 = vunpack.c.l.b16 %v85
  %v134 = vunpack.c.l.b16 %v86
  %v135 = vunpack.c.l.b16 %v87
  %v136 = vunpack.c.l.b16 %v88
  %v137 = vunpack.c.l.b16 %v89
  %v138 = vunpack.c.l.b16 %v90
  %v139 = vunpack.c.l.b16 %v91
  %v140 = vunpack.c.l.b16 %v92
  %v141 = vunpack.c.l.b16 %v93
  %v142 = vunpack.c.l.b16 %v94
  %v143 = vunpack.c.l.b16 %v95
  %v144 = vunpack.c.l.b16 %v96
  %v145 = vunpack.c.l.b16 %v97
  %v146 = vunpack.c.l.b16 %v98
  %v147 = vunpack.c.l.b16 %v99
  %v148 = vunpack.c.l.b16 %v100
  %v149 = vunpack.c.l.b16 %v101
  %v150 = vunpack.c.l.b16 %v102
  %v151 = vunpack.c.l.b16 %v103
  %v152 = vpack.c.b16 %v129, %v128
  %v153 = vpack.c.b16 %v131, %v130
  %v154 = vpack.c.b16 %v133, %v132
  %v155 = vpack.c.b16 %v135, %v134
  %v156 = vpack.c.b16 %v137, %v136
  %v157 = vpack.c.b16 %v139, %v138
  %v158 = vpack.c.b16 %v141, %v140
  %v159 = vpack.c.b16 %v143, %v142
  %v160 = vpack.c.b16 %v145, %v144
  %v161 = vpack.c.b16 %v147, %v146
  %v162 = vpack.c.b16 %v149, %v148
  %v163 = vpack.c.b16 %v151, %v150
  %v177 = vsel %vm71, %v65, 0
  %v180 = vsel %vm71, %v66, 0
  %182 = vmatprep.subr.bf16.mxu0 0
  %183 = vmatpush1.bf16.msra.mxu0 %v152
  %184 = vmatprep.subr.bf16.mxu0 0
  %185 = vmatpush1.bf16.msra.mxu0 %v153
  %186 = vmatprep.subr.bf16.mxu0 0
  %187 = vmatpush1.bf16.msra.mxu0 %v154
  %188 = vmatprep.subr.bf16.mxu0 0
  %189 = vmatpush1.bf16.msra.mxu0 %v155
  %190 = vmatprep.subr.bf16.mxu0 0
  %191 = vmatpush1.bf16.msra.mxu0 %v156
  %192 = vmatprep.subr.bf16.mxu0 0
  %193 = vmatpush1.bf16.msra.mxu0 %v157
  %194 = vmatprep.subr.bf16.mxu0 0
  %195 = vmatpush1.bf16.msra.mxu0 %v158
  %196 = vmatprep.subr.bf16.mxu0 0
  %197 = vmatpush1.bf16.msra.mxu0 %v159
  %198 = vmatprep.subr.bf16.mxu0 0
  %199 = vmatpush1.bf16.msra.mxu0 %v160
  %200 = vmatprep.subr.bf16.mxu0 0
  %201 = vmatpush1.bf16.msra.mxu0 %v161
  %202 = vmatprep.subr.bf16.mxu0 0
  %203 = vmatpush1.bf16.msra.mxu0 %v162
  %204 = vmatprep.subr.bf16.mxu0 0
  %205 = vmatpush1.bf16.msra.mxu0 %v163
  %206 = vmatprep.subr.bf16.mxu0 0
  %207 = vmatpush1.bf16.msra.mxu0 0
  %208 = vmatprep.subr.bf16.mxu0 0
  %209 = vmatpush1.bf16.msra.mxu0 0
  %210 = vmatprep.subr.bf16.mxu0 0
  %211 = vmatpush1.bf16.msra.mxu0 0
  %212 = vmatprep.subr.bf16.mxu0 0
  %213 = vmatpush1.bf16.msra.mxu0 0
  %214 = vmatprep.mubr.bf16.mxu0 %v177
  %215 = vmatmul.mubr.bf16.gmra.mrb[0].mxu0 %v74
  %v216 = vpop.f32.mrb[0].mxu0
  %v217 = vadd.f32 0.0, %v216
  %v218 = vpop.f32.mrb[0].mxu0
  %v219 = vpop.f32.mrb[0].mxu0
  %v220 = vadd.f32 0.0, %v219
  %v221 = vpop.f32.mrb[0].mxu0
  %222 = vmatprep.mubr.bf16.mxu0 %v180
  %223 = vmatmul.mubr.bf16.gmra.mrb[0].mxu0 %v78
  %v224 = vpop.f32.mrb[0].mxu0
  %v225 = vadd.f32 0.0, %v224
  %v226 = vpop.f32.mrb[0].mxu0
  %v227 = vpop.f32.mrb[0].mxu0
  %v228 = vadd.f32 0.0, %v227
  %v229 = vpop.f32.mrb[0].mxu0
  %230 = vdwg.mxu0
  %v231 = vpack.c.bf16 %v220, %v217
  %v232 = vpack.c.bf16 %v228, %v225
  %v235 = vunpack.c.l.b16 %v231
  %v236 = vunpack.c.h.b16 %v231
  %v237 = vunpack.c.l.b16 %v232
  %v238 = vunpack.c.h.b16 %v232
  %v239 = vpack.c.b16 %v235, %v235
  %v240 = vpack.c.b16 %v236, %v236
  %v241 = vpack.c.b16 %v237, %v237
  %v242 = vpack.c.b16 %v238, %v238
  %247 = vst [vmem:[%s4] sm:$0xf] %v239
  %248 = vst [vmem:[%s4 + $0x4] sm:$0xf] %v240
  %249 = vst [vmem:[%s4 + $0x8] sm:$0xf] %v241
  %250 = vst [vmem:[%s4 + $0xc] sm:$0xf] %v242
  %v251 = vadd.f32 %v217, %v220
  %v252 = vadd.f32 %v251, %v225
  %v253 = vadd.f32 %v252, %v228
  %v254 = vrot.slane %v253, 4
  %v255 = vadd.f32 %v253, %v254
  %v256 = vrot.slane %v255, 2
  %v257 = vadd.f32 %v255, %v256
  %v258 = vrot.slane %v257, 1
  %v259 = vadd.f32 %v257, %v258
  %v260 = vmul.f32 %v217, %v217
  %v261 = vmul.f32 %v220, %v220
  %v262 = vmul.f32 %v225, %v225
  %v263 = vmul.f32 %v228, %v228
  %v264 = vadd.f32 %v260, %v261
  %v265 = vadd.f32 %v264, %v262
  %v266 = vadd.f32 %v265, %v263
  %v267 = vrot.slane %v266, 4
  %v268 = vadd.f32 %v266, %v267
  %v269 = vrot.slane %v268, 2
  %v270 = vadd.f32 %v268, %v269
  %v271 = vrot.slane %v270, 1
  %v272 = vadd.f32 %v270, %v271
  %vm273 = vcmask 1040384
  %v274 = vsel %vm273, %v259, %v272
  %275 = vst [vmem:[%s6] sm:$0x3] %v274
  %v276 = vld [vmem:[%s2] sm:$0xf]
  %v277 = vld [vmem:[%s2 + $0x4] sm:$0xf]
  %v278 = vld [vmem:[%s2 + $0x8] sm:$0xf]
  %v279 = vld [vmem:[%s2 + $0xc] sm:$0xf]
  %v280 = vld [vmem:[%s2 + $0x10] sm:$0xf]
  %v281 = vld [vmem:[%s2 + $0x14] sm:$0xf]
  %v282 = vld [vmem:[%s2 + $0x18] sm:$0xf]
  %v283 = vld [vmem:[%s2 + $0x1c] sm:$0xf]
  %v284 = vld [vmem:[%s3] sm:$0x1]
  %v286 = vlaneseq
  %v287 = vshrl.u32 %v286, 7
  %v288 = vsub.s32 0, %v287
  %v289 = vrot.slane %v284, %v288
  %v299 = vunpack.c.l.b16 %v276
  %v300 = vunpack.c.l.b16 %v277
  %v301 = vunpack.c.l.b16 %v278
  %v302 = vunpack.c.l.b16 %v279
  %v303 = vunpack.c.l.b16 %v280
  %v304 = vunpack.c.l.b16 %v281
  %v305 = vunpack.c.l.b16 %v282
  %v306 = vunpack.c.l.b16 %v283
  %v307 = vpack.c.b16 %v300, %v299
  %v308 = vpack.c.b16 %v302, %v301
  %v309 = vpack.c.b16 %v304, %v303
  %v310 = vpack.c.b16 %v306, %v305
  %v315 = vsel %vm71, %v33, 0
  %v317 = vsel %vm71, %v34, 0
  %319 = vmatprep.subr.bf16.mxu0 0
  %320 = vmatpush1.bf16.msra.mxu0 %v307
  %321 = vmatprep.subr.bf16.mxu0 0
  %322 = vmatpush1.bf16.msra.mxu0 %v308
  %323 = vmatprep.subr.bf16.mxu0 0
  %324 = vmatpush1.bf16.msra.mxu0 %v309
  %325 = vmatprep.subr.bf16.mxu0 0
  %326 = vmatpush1.bf16.msra.mxu0 %v310
  %327 = vmatprep.subr.bf16.mxu0 0
  %328 = vmatpush1.bf16.msra.mxu0 0
  %329 = vmatprep.subr.bf16.mxu0 0
  %330 = vmatpush1.bf16.msra.mxu0 0
  %331 = vmatprep.subr.bf16.mxu0 0
  %332 = vmatpush1.bf16.msra.mxu0 0
  %333 = vmatprep.subr.bf16.mxu0 0
  %334 = vmatpush1.bf16.msra.mxu0 0
  %335 = vmatprep.subr.bf16.mxu0 0
  %336 = vmatpush1.bf16.msra.mxu0 0
  %337 = vmatprep.subr.bf16.mxu0 0
  %338 = vmatpush1.bf16.msra.mxu0 0
  %339 = vmatprep.subr.bf16.mxu0 0
  %340 = vmatpush1.bf16.msra.mxu0 0
  %341 = vmatprep.subr.bf16.mxu0 0
  %342 = vmatpush1.bf16.msra.mxu0 0
  %343 = vmatprep.subr.bf16.mxu0 0
  %344 = vmatpush1.bf16.msra.mxu0 0
  %345 = vmatprep.subr.bf16.mxu0 0
  %346 = vmatpush1.bf16.msra.mxu0 0
  %347 = vmatprep.subr.bf16.mxu0 0
  %348 = vmatpush1.bf16.msra.mxu0 0
  %349 = vmatprep.subr.bf16.mxu0 0
  %350 = vmatpush1.bf16.msra.mxu0 0
  %351 = vmatprep.mubr.bf16.mxu0 0
  %352 = vmatmul.mubr.bf16.gmra.mrb[0].mxu0 %v315
  %v353 = vpop.f32.mrb[0].mxu0
  %v354 = vadd.f32 %v289, %v353
  %v355 = vpop.f32.mrb[0].mxu0
  %v356 = vpop.f32.mrb[0].mxu0
  %v357 = vadd.f32 %v289, %v356
  %v358 = vpop.f32.mrb[0].mxu0
  %359 = vmatprep.mubr.bf16.mxu0 0
  %360 = vmatmul.mubr.bf16.gmra.mrb[0].mxu0 %v317
  %v361 = vpop.f32.mrb[0].mxu0
  %v362 = vadd.f32 %v289, %v361
  %v363 = vpop.f32.mrb[0].mxu0
  %v364 = vpop.f32.mrb[0].mxu0
  %v365 = vadd.f32 %v289, %v364
  %v366 = vpop.f32.mrb[0].mxu0
  %367 = vdwg.mxu0
  %v368 = vpack.c.bf16 %v357, %v354
  %v369 = vpack.c.bf16 %v365, %v362
  %v372 = vunpack.c.l.b16 %v368
  %v373 = vunpack.c.h.b16 %v368
  %v374 = vunpack.c.l.b16 %v369
  %v375 = vunpack.c.h.b16 %v369
  %v376 = vpack.c.b16 %v372, %v372
  %v377 = vpack.c.b16 %v373, %v373
  %v378 = vpack.c.b16 %v374, %v374
  %v379 = vpack.c.b16 %v375, %v375
  %384 = vst [vmem:[%s5] sm:$0xf] %v376
  %385 = vst [vmem:[%s5 + $0x4] sm:$0xf] %v377
  %386 = vst [vmem:[%s5 + $0x8] sm:$0xf] %v378
  %387 = vst [vmem:[%s5 + $0xc] sm:$0xf] %v379
  // Predicated region
  $region18: #{resnet_block.3} parent=0 // pred_check
    _
  $region19: #{resnet_block.3} parent=0 // pred_check_branch
    %389 = sbr.rel (0) target = $region21
  $region20: #{resnet_block.3} parent=0 // pred_region
    _
  $region21: #{resnet_block.3} parent=0 // pred_fallthru
    _
  // Predicated region
  $region22: #{resnet_block.3} parent=0 // pred_check
    _
  $region23: #{resnet_block.3} parent=0 // pred_check_branch
    %391 = sbr.rel (0) target = $region25
  $region24: #{resnet_block.3} parent=0 // pred_region
    _
  $region25: #{resnet_block.3} parent=0 // pred_fallthru
    _
  // Predicated region
  $region26: #{resnet_block.3} parent=0 // pred_check
    _
  $region27: #{resnet_block.3} parent=0 // pred_check_branch
    %393 = sbr.rel (0) target = $region29
  $region28: #{resnet_block.3} parent=0 // pred_region
    _
  $region29: #{resnet_block.3} parent=0 // pred_fallthru
    _
  // Predicated region
  $region30: #{resnet_block.3} parent=0 // pred_check
    _
  $region31: #{resnet_block.3} parent=0 // pred_check_branch
    %395 = sbr.rel (0) target = $region33
  $region32: #{resnet_block.3} parent=0 // pred_region
    _
  $region33: #{resnet_block.3} parent=0 // pred_fallthru
    _
  // Predicated region
  $region34: #{resnet_block.3} parent=0 // pred_check
    _
  $region35: #{resnet_block.3} parent=0 // pred_check_branch
    %397 = sbr.rel (0) target = $region37
  $region36: #{resnet_block.3} parent=0 // pred_region
    _
  $region37: #{resnet_block.3} parent=0 // pred_fallthru
    _
  // Predicated region
  $region38: #{resnet_block.3} parent=0 // pred_check
    _
  $region39: #{resnet_block.3} parent=0 // pred_check_branch
    %399 = sbr.rel (0) target = $region41
  $region40: #{resnet_block.3} parent=0 // pred_region
    _
  $region41: #{resnet_block.3} parent=0 // pred_fallthru
    _

// kernel: resnet_block.4
$region0: #{resnet_block.4}
  #allocation0 [shape = 'u32[]', space=smem, size = 0x4, offset = 0x4, fixed_abs, tag = 'smem constant byte address 0x4 - core index']
  #allocation1 [shape = 'u32[144,128]{1,0:T(1,128)}', space=vmem, size = 0x12000, scoped, tag = 'internal scratch']
  %s0 = inlined_call_operand.vmem [shape: bf16[2,16,128], index: 0, kind: input, shape index: {}]
  %s1 = inlined_call_operand.vmem [shape: f32[1,128], index: 1, kind: input, shape index: {}]
  %s2 = inlined_call_operand.vmem [shape: f32[1,128], index: 2, kind: input, shape index: {}]
  %s3 = inlined_call_operand.vmem [shape: bf16[384,128], index: 3, kind: input, shape index: {}]
  %s4 = inlined_call_operand.vmem [shape: bf16[2,16,128], index: 4, kind: output, shape index: {0}]
  %s5 = inlined_call_operand.vmem [shape: f32[1,2,128], index: 5, kind: output, shape index: {1}]
  %6 = xla_tuple %s4, %s5
  %s7 = sld [smem:[#allocation0]]
  $region34: #{resnet_block.4} parent=0
    _
  %s9 = ssub.s32 1, %s7
  %s10 = scalar_select 0, %s9, %s7
  // Predicated region
  $region2: #{resnet_block.4} parent=0 // pred_check
    _
  $region3: #{resnet_block.4} parent=0 // pred_check_branch
    %12 = sbr.rel (0) target = $region5
  $region4: #{resnet_block.4} parent=0 // pred_region
    _
  $region5: #{resnet_block.4} parent=0 // pred_fallthru
    _
  // Predicated region
  $region6: #{resnet_block.4} parent=0 // pred_check
    _
  $region7: #{resnet_block.4} parent=0 // pred_check_branch
    %14 = sbr.rel (0) target = $region9
  $region8: #{resnet_block.4} parent=0 // pred_region
    _
  $region9: #{resnet_block.4} parent=0 // pred_fallthru
    _
  // Predicated region
  $region10: #{resnet_block.4} parent=0 // pred_check
    _
  $region11: #{resnet_block.4} parent=0 // pred_check_branch
    %16 = sbr.rel (0) target = $region13
  $region12: #{resnet_block.4} parent=0 // pred_region
    _
  $region13: #{resnet_block.4} parent=0 // pred_fallthru
    _
  // Predicated region
  $region14: #{resnet_block.4} parent=0 // pred_check
    _
  $region15: #{resnet_block.4} parent=0 // pred_check_branch
    %18 = sbr.rel (0) target = $region17
  $region16: #{resnet_block.4} parent=0 // pred_region
    _
  $region17: #{resnet_block.4} parent=0 // pred_fallthru
    _
  %v20 = vld [vmem:[%s0] sm:$0xf]
  %v21 = vld [vmem:[%s0 + $0x4] sm:$0xf]
  %v22 = vld [vmem:[%s0 + $0x8] sm:$0xf]
  %v23 = vld [vmem:[%s0 + $0xc] sm:$0xf]
  %v24 = vunpack.c.l.bf16 %v20
  %v25 = vunpack.c.l.bf16 %v21
  %v26 = vunpack.c.l.bf16 %v22
  %v27 = vunpack.c.l.bf16 %v23
  %v28 = vld [vmem:[%s1] sm:$0x1]
  %v30 = vlaneseq
  %v31 = vshrl.u32 %v30, 7
  %v32 = vsub.s32 0, %v31
  %v33 = vrot.slane %v28, %v32
  %v35 = vmul.f32 %v24, %v33
  %v36 = vmul.f32 %v25, %v33
  %v37 = vmul.f32 %v26, %v33
  %v38 = vmul.f32 %v27, %v33
  %v39 = vld [vmem:[%s2] sm:$0x1]
  %v41 = vlaneseq
  %v42 = vshrl.u32 %v41, 7
  %v43 = vsub.s32 0, %v42
  %v44 = vrot.slane %v39, %v43
  %v46 = vadd.f32 %v35, %v44
  %v47 = vadd.f32 %v36, %v44
  %v48 = vadd.f32 %v37, %v44
  %v49 = vadd.f32 %v38, %v44
  %vm50 = vcmp.ge.f32.partialorder %v46, 0.0
  %vm51 = vcmp.ge.f32.partialorder %v47, 0.0
  %vm52 = vcmp.ge.f32.partialorder %v48, 0.0
  %vm53 = vcmp.ge.f32.partialorder %v49, 0.0
  %v54 = vmul.f32 %v46, 0.0
  %v55 = vmul.f32 %v47, 0.0
  %v56 = vmul.f32 %v48, 0.0
  %v57 = vmul.f32 %v49, 0.0
  %v58 = vsel %vm50, %v46, %v54
  %v59 = vsel %vm51, %v47, %v55
  %v60 = vsel %vm52, %v48, %v56
  %v61 = vsel %vm53, %v49, %v57
  %v62 = vpack.c.bf16 %v59, %v58
  %v63 = vpack.c.bf16 %v61, %v60
  %v65 = vshrl.u32 %v62, 16
  %v67 = vrot.slane %v65, 7
  %v68 = vshll.u32 %v62, 16
  %v70 = vor.u32 %v67, %v68
  %v72 = vshrl.u32 %v63, 16
  %v74 = vrot.slane %v72, 7
  %v75 = vshll.u32 %v63, 16
  %v77 = vor.u32 %v74, %v75
  %vm80 = vcmask 1040384
  %vm81 = vsmask.f32 256
  %vm82 = vmand %vm80, %vm81
  %v83 = vsel %vm82, 0, %v70
  %v84 = vsel %vm82, 0, %v77
  %v85 = vrot.slane %v68, 1
  %v86 = vor.u32 %v65, %v85
  %v87 = vrot.slane %v75, 1
  %v88 = vor.u32 %v72, %v87
  %vm91 = vcmask 1047552
  %vm92 = vsmask.f32 7424
  %vm93 = vmand %vm91, %vm92
  %v94 = vsel %vm93, %v86, 0
  %v95 = vsel %vm93, %v88, 0
  %v96 = vld [vmem:[%s3] sm:$0xf]
  %v97 = vld [vmem:[%s3 + $0x4] sm:$0xf]
  %v98 = vld [vmem:[%s3 + $0x8] sm:$0xf]
  %v99 = vld [vmem:[%s3 + $0xc] sm:$0xf]
  %v100 = vld [vmem:[%s3 + $0x10] sm:$0xf]
  %v101 = vld [vmem:[%s3 + $0x14] sm:$0xf]
  %v102 = vld [vmem:[%s3 + $0x18] sm:$0xf]
  %v103 = vld [vmem:[%s3 + $0x1c] sm:$0xf]
  %v104 = vld [vmem:[%s3 + $0x20] sm:$0xf]
  %v105 = vld [vmem:[%s3 + $0x24] sm:$0xf]
  %v106 = vld [vmem:[%s3 + $0x28] sm:$0xf]
  %v107 = vld [vmem:[%s3 + $0x2c] sm:$0xf]
  %v108 = vld [vmem:[%s3 + $0x30] sm:$0xf]
  %v109 = vld [vmem:[%s3 + $0x34] sm:$0xf]
  %v110 = vld [vmem:[%s3 + $0x38] sm:$0xf]
  %v111 = vld [vmem:[%s3 + $0x3c] sm:$0xf]
  %v112 = vld [vmem:[%s3 + $0x40] sm:$0xf]
  %v113 = vld [vmem:[%s3 + $0x44] sm:$0xf]
  %v114 = vld [vmem:[%s3 + $0x48] sm:$0xf]
  %v115 = vld [vmem:[%s3 + $0x4c] sm:$0xf]
  %v116 = vld [vmem:[%s3 + $0x50] sm:$0xf]
  %v117 = vld [vmem:[%s3 + $0x54] sm:$0xf]
  %v118 = vld [vmem:[%s3 + $0x58] sm:$0xf]
  %v119 = vld [vmem:[%s3 + $0x5c] sm:$0xf]
  %v120 = vld [vmem:[%s3 + $0x60] sm:$0xf]
  %v121 = vld [vmem:[%s3 + $0x64] sm:$0xf]
  %v122 = vld [vmem:[%s3 + $0x68] sm:$0xf]
  %v123 = vld [vmem:[%s3 + $0x6c] sm:$0xf]
  %v124 = vld [vmem:[%s3 + $0x70] sm:$0xf]
  %v125 = vld [vmem:[%s3 + $0x74] sm:$0xf]
  %v126 = vld [vmem:[%s3 + $0x78] sm:$0xf]
  %v127 = vld [vmem:[%s3 + $0x7c] sm:$0xf]
  %v128 = vld [vmem:[%s3 + $0x80] sm:$0xf]
  %v129 = vld [vmem:[%s3 + $0x84] sm:$0xf]
  %v130 = vld [vmem:[%s3 + $0x88] sm:$0xf]
  %v131 = vld [vmem:[%s3 + $0x8c] sm:$0xf]
  %v132 = vld [vmem:[%s3 + $0x90] sm:$0xf]
  %v133 = vld [vmem:[%s3 + $0x94] sm:$0xf]
  %v134 = vld [vmem:[%s3 + $0x98] sm:$0xf]
  %v135 = vld [vmem:[%s3 + $0x9c] sm:$0xf]
  %v136 = vld [vmem:[%s3 + $0xa0] sm:$0xf]
  %v137 = vld [vmem:[%s3 + $0xa4] sm:$0xf]
  %v138 = vld [vmem:[%s3 + $0xa8] sm:$0xf]
  %v139 = vld [vmem:[%s3 + $0xac] sm:$0xf]
  %v140 = vld [vmem:[%s3 + $0xb0] sm:$0xf]
  %v141 = vld [vmem:[%s3 + $0xb4] sm:$0xf]
  %v142 = vld [vmem:[%s3 + $0xb8] sm:$0xf]
  %v143 = vld [vmem:[%s3 + $0xbc] sm:$0xf]
  %v192 = vunpack.c.l.b16 %v96
  %v193 = vunpack.c.l.b16 %v97
  %v194 = vunpack.c.l.b16 %v98
  %v195 = vunpack.c.l.b16 %v99
  %v196 = vunpack.c.l.b16 %v100
  %v197 = vunpack.c.l.b16 %v101
  %v198 = vunpack.c.l.b16 %v102
  %v199 = vunpack.c.l.b16 %v103
  %v200 = vunpack.c.l.b16 %v104
  %v201 = vunpack.c.l.b16 %v105
  %v202 = vunpack.c.l.b16 %v106
  %v203 = vunpack.c.l.b16 %v107
  %v204 = vunpack.c.l.b16 %v108
  %v205 = vunpack.c.l.b16 %v109
  %v206 = vunpack.c.l.b16 %v110
  %v207 = vunpack.c.l.b16 %v111
  %v208 = vunpack.c.l.b16 %v112
  %v209 = vunpack.c.l.b16 %v113
  %v210 = vunpack.c.l.b16 %v114
  %v211 = vunpack.c.l.b16 %v115
  %v212 = vunpack.c.l.b16 %v116
  %v213 = vunpack.c.l.b16 %v117
  %v214 = vunpack.c.l.b16 %v118
  %v215 = vunpack.c.l.b16 %v119
  %v216 = vunpack.c.l.b16 %v120
  %v217 = vunpack.c.l.b16 %v121
  %v218 = vunpack.c.l.b16 %v122
  %v219 = vunpack.c.l.b16 %v123
  %v220 = vunpack.c.l.b16 %v124
  %v221 = vunpack.c.l.b16 %v125
  %v222 = vunpack.c.l.b16 %v126
  %v223 = vunpack.c.l.b16 %v127
  %v224 = vunpack.c.l.b16 %v128
  %v225 = vunpack.c.l.b16 %v129
  %v226 = vunpack.c.l.b16 %v130
  %v227 = vunpack.c.l.b16 %v131
  %v228 = vunpack.c.l.b16 %v132
  %v229 = vunpack.c.l.b16 %v133
  %v230 = vunpack.c.l.b16 %v134
  %v231 = vunpack.c.l.b16 %v135
  %v232 = vunpack.c.l.b16 %v136
  %v233 = vunpack.c.l.b16 %v137
  %v234 = vunpack.c.l.b16 %v138
  %v235 = vunpack.c.l.b16 %v139
  %v236 = vunpack.c.l.b16 %v140
  %v237 = vunpack.c.l.b16 %v141
  %v238 = vunpack.c.l.b16 %v142
  %v239 = vunpack.c.l.b16 %v143
  %v240 = vpack.c.b16 %v193, %v192
  %v241 = vpack.c.b16 %v195, %v194
  %v242 = vpack.c.b16 %v197, %v196
  %v243 = vpack.c.b16 %v199, %v198
  %v244 = vpack.c.b16 %v201, %v200
  %v245 = vpack.c.b16 %v203, %v202
  %v246 = vpack.c.b16 %v205, %v204
  %v247 = vpack.c.b16 %v207, %v206
  %v248 = vpack.c.b16 %v209, %v208
  %v249 = vpack.c.b16 %v211, %v210
  %v250 = vpack.c.b16 %v213, %v212
  %v251 = vpack.c.b16 %v215, %v214
  %v252 = vpack.c.b16 %v217, %v216
  %v253 = vpack.c.b16 %v219, %v218
  %v254 = vpack.c.b16 %v221, %v220
  %v255 = vpack.c.b16 %v223, %v222
  %v256 = vpack.c.b16 %v225, %v224
  %v257 = vpack.c.b16 %v227, %v226
  %v258 = vpack.c.b16 %v229, %v228
  %v259 = vpack.c.b16 %v231, %v230
  %v260 = vpack.c.b16 %v233, %v232
  %v261 = vpack.c.b16 %v235, %v234
  %v262 = vpack.c.b16 %v237, %v236
  %v263 = vpack.c.b16 %v239, %v238
  %288 = vmatprep.subr.bf16.mxu0 0
  %289 = vmatpush1.bf16.msra.mxu0 %v240
  %290 = vmatprep.subr.bf16.mxu0 0
  %291 = vmatpush1.bf16.msra.mxu0 %v241
  %292 = vmatprep.subr.bf16.mxu0 0
  %293 = vmatpush1.bf16.msra.mxu0 %v242
  %294 = vmatprep.subr.bf16.mxu0 0
  %295 = vmatpush1.bf16.msra.mxu0 %v243
  %296 = vmatprep.subr.bf16.mxu0 0
  %297 = vmatpush1.bf16.msra.mxu0 %v244
  %298 = vmatprep.subr.bf16.mxu0 0
  %299 = vmatpush1.bf16.msra.mxu0 %v245
  %300 = vmatprep.subr.bf16.mxu0 0
  %301 = vmatpush1.bf16.msra.mxu0 %v246
  %302 = vmatprep.subr.bf16.mxu0 0
  %303 = vmatpush1.bf16.msra.mxu0 %v247
  %304 = vmatprep.subr.bf16.mxu0 0
  %305 = vmatpush1.bf16.msra.mxu0 %v248
  %306 = vmatprep.subr.bf16.mxu0 0
  %307 = vmatpush1.bf16.msra.mxu0 %v249
  %308 = vmatprep.subr.bf16.mxu0 0
  %309 = vmatpush1.bf16.msra.mxu0 %v250
  %310 = vmatprep.subr.bf16.mxu0 0
  %311 = vmatpush1.bf16.msra.mxu0 %v251
  %312 = vmatprep.subr.bf16.mxu0 0
  %313 = vmatpush1.bf16.msra.mxu0 %v252
  %314 = vmatprep.subr.bf16.mxu0 0
  %315 = vmatpush1.bf16.msra.mxu0 %v253
  %316 = vmatprep.subr.bf16.mxu0 0
  %317 = vmatpush1.bf16.msra.mxu0 %v254
  %318 = vmatprep.subr.bf16.mxu0 0
  %319 = vmatpush1.bf16.msra.mxu0 %v255
  %320 = vmatprep.mubr.bf16.mxu0 %v62
  %321 = vmatmul.mubr.bf16.gmra.mrb[0].mxu0 %v83
  %v322 = vpop.f32.mrb[0].mxu0
  %v323 = vadd.f32 0.0, %v322
  %v324 = vpop.f32.mrb[0].mxu0
  %v325 = vpop.f32.mrb[0].mxu0
  %v326 = vadd.f32 0.0, %v325
  %v327 = vpop.f32.mrb[0].mxu0
  %328 = vmatprep.mubr.bf16.mxu0 %v63
  %329 = vmatmul.mubr.bf16.gmra.mrb[0].mxu0 %v84
  %v330 = vpop.f32.mrb[0].mxu0
  %v331 = vadd.f32 0.0, %v330
  %v332 = vpop.f32.mrb[0].mxu0
  %v333 = vpop.f32.mrb[0].mxu0
  %v334 = vadd.f32 0.0, %v333
  %v335 = vpop.f32.mrb[0].mxu0
  %336 = vdwg.mxu0
  %337 = vmatprep.subr.bf16.mxu0 0
  %338 = vmatpush1.bf16.msra.mxu0 %v256
  %339 = vmatprep.subr.bf16.mxu0 0
  %340 = vmatpush1.bf16.msra.mxu0 %v257
  %341 = vmatprep.subr.bf16.mxu0 0
  %342 = vmatpush1.bf16.msra.mxu0 %v258
  %343 = vmatprep.subr.bf16.mxu0 0
  %344 = vmatpush1.bf16.msra.mxu0 %v259
  %345 = vmatprep.subr.bf16.mxu0 0
  %346 = vmatpush1.bf16.msra.mxu0 %v260
  %347 = vmatprep.subr.bf16.mxu0 0
  %348 = vmatpush1.bf16.msra.mxu0 %v261
  %349 = vmatprep.subr.bf16.mxu0 0
  %350 = vmatpush1.bf16.msra.mxu0 %v262
  %351 = vmatprep.subr.bf16.mxu0 0
  %352 = vmatpush1.bf16.msra.mxu0 %v263
  %353 = vmatprep.subr.bf16.mxu0 0
  %354 = vmatpush1.bf16.msra.mxu0 0
  %355 = vmatprep.subr.bf16.mxu0 0
  %356 = vmatpush1.bf16.msra.mxu0 0
  %357 = vmatprep.subr.bf16.mxu0 0
  %358 = vmatpush1.bf16.msra.mxu0 0
  %359 = vmatprep.subr.bf16.mxu0 0
  %360 = vmatpush1.bf16.msra.mxu0 0
  %361 = vmatprep.subr.bf16.mxu0 0
  %362 = vmatpush1.bf16.msra.mxu0 0
  %363 = vmatprep.subr.bf16.mxu0 0
  %364 = vmatpush1.bf16.msra.mxu0 0
  %365 = vmatprep.subr.bf16.mxu0 0
  %366 = vmatpush1.bf16.msra.mxu0 0
  %367 = vmatprep.subr.bf16.mxu0 0
  %368 = vmatpush1.bf16.msra.mxu0 0
  %369 = vmatprep.mubr.bf16.mxu0 0
  %370 = vmatmul.mubr.bf16.gmra.mrb[0].mxu0 %v94
  %v371 = vpop.f32.mrb[0].mxu0
  %v372 = vadd.f32 %v323, %v371
  %v373 = vpop.f32.mrb[0].mxu0
  %v374 = vpop.f32.mrb[0].mxu0
  %v375 = vadd.f32 %v326, %v374
  %v376 = vpop.f32.mrb[0].mxu0
  %377 = vmatprep.mubr.bf16.mxu0 0
  %378 = vmatmul.mubr.bf16.gmra.mrb[0].mxu0 %v95
  %v379 = vpop.f32.mrb[0].mxu0
  %v380 = vadd.f32 %v331, %v379
  %v381 = vpop.f32.mrb[0].mxu0
  %v382 = vpop.f32.mrb[0].mxu0
  %v383 = vadd.f32 %v334, %v382
  %v384 = vpop.f32.mrb[0].mxu0
  %385 = vdwg.mxu0
  %v386 = vpack.c.bf16 %v375, %v372
  %v387 = vpack.c.bf16 %v383, %v380
  %v390 = vunpack.c.l.b16 %v386
  %v391 = vunpack.c.h.b16 %v386
  %v392 = vunpack.c.l.b16 %v387
  %v393 = vunpack.c.h.b16 %v387
  %v394 = vpack.c.b16 %v390, %v390
  %v395 = vpack.c.b16 %v391, %v391
  %v396 = vpack.c.b16 %v392, %v392
  %v397 = vpack.c.b16 %v393, %v393
  %402 = vst [vmem:[%s4] sm:$0xf] %v394
  %403 = vst [vmem:[%s4 + $0x4] sm:$0xf] %v395
  %404 = vst [vmem:[%s4 + $0x8] sm:$0xf] %v396
  %405 = vst [vmem:[%s4 + $0xc] sm:$0xf] %v397
  %v406 = vadd.f32 %v372, %v375
  %v407 = vadd.f32 %v406, %v380
  %v408 = vadd.f32 %v407, %v383
  %v409 = vrot.slane %v408, 4
  %v410 = vadd.f32 %v408, %v409
  %v411 = vrot.slane %v410, 2
  %v412 = vadd.f32 %v410, %v411
  %v413 = vrot.slane %v412, 1
  %v414 = vadd.f32 %v412, %v413
  %v415 = vmul.f32 %v372, %v372
  %v416 = vmul.f32 %v375, %v375
  %v417 = vmul.f32 %v380, %v380
  %v418 = vmul.f32 %v383, %v383
  %v419 = vadd.f32 %v415, %v416
  %v420 = vadd.f32 %v419, %v417
  %v421 = vadd.f32 %v420, %v418
  %v422 = vrot.slane %v421, 4
  %v423 = vadd.f32 %v421, %v422
  %v424 = vrot.slane %v423, 2
  %v425 = vadd.f32 %v423, %v424
  %v426 = vrot.slane %v425, 1
  %v427 = vadd.f32 %v425, %v426
  %vm428 = vcmask 1040384
  %v429 = vsel %vm428, %v414, %v427
  %430 = vst [vmem:[%s5] sm:$0x3] %v429
  // Predicated region
  $region18: #{resnet_block.4} parent=0 // pred_check
    _
  $region19: #{resnet_block.4} parent=0 // pred_check_branch
    %432 = sbr.rel (0) target = $region21
  $region20: #{resnet_block.4} parent=0 // pred_region
    _
  $region21: #{resnet_block.4} parent=0 // pred_fallthru
    _
  // Predicated region
  $region22: #{resnet_block.4} parent=0 // pred_check
    _
  $region23: #{resnet_block.4} parent=0 // pred_check_branch
    %434 = sbr.rel (0) target = $region25
  $region24: #{resnet_block.4} parent=0 // pred_region
    _
  $region25: #{resnet_block.4} parent=0 // pred_fallthru
    _
  // Predicated region
  $region26: #{resnet_block.4} parent=0 // pred_check
    _
  $region27: #{resnet_block.4} parent=0 // pred_check_branch
    %436 = sbr.rel (0) target = $region29
  $region28: #{resnet_block.4} parent=0 // pred_region
    _
  $region29: #{resnet_block.4} parent=0 // pred_fallthru
    _
  // Predicated region
  $region30: #{resnet_block.4} parent=0 // pred_check
    _
  $region31: #{resnet_block.4} parent=0 // pred_check_branch
    %438 = sbr.rel (0) target = $region33
  $region32: #{resnet_block.4} parent=0 // pred_region
    _
  $region33: #{resnet_block.4} parent=0 // pred_fallthru
    _

// kernel: resnet_block.5
$region0: #{resnet_block.5}
  #allocation0 [shape = 'u32[]', space=smem, size = 0x4, offset = 0x4, fixed_abs, tag = 'smem constant byte address 0x4 - core index']
  #allocation1 [shape = 'u32[144,128]{1,0:T(1,128)}', space=vmem, size = 0x12000, scoped, tag = 'internal scratch']
  %s0 = inlined_call_operand.vmem [shape: bf16[2,16,128], index: 0, kind: input, shape index: {}]
  %s1 = inlined_call_operand.vmem [shape: f32[1,128], index: 1, kind: input, shape index: {}]
  %s2 = inlined_call_operand.vmem [shape: f32[1,128], index: 2, kind: input, shape index: {}]
  %s3 = inlined_call_operand.vmem [shape: bf16[2,16,128], index: 3, kind: input, shape index: {}]
  %s4 = inlined_call_operand.vmem [shape: f32[2,16,128], index: 4, kind: output, shape index: {}]
  %s5 = sld [smem:[#allocation0]]
  $region26: #{resnet_block.5} parent=0
    _
  %s7 = ssub.s32 1, %s5
  %s8 = scalar_select 0, %s7, %s5
  // Predicated region
  $region2: #{resnet_block.5} parent=0 // pred_check
    _
  $region3: #{resnet_block.5} parent=0 // pred_check_branch
    %10 = sbr.rel (0) target = $region5
  $region4: #{resnet_block.5} parent=0 // pred_region
    _
  $region5: #{resnet_block.5} parent=0 // pred_fallthru
    _
  // Predicated region
  $region6: #{resnet_block.5} parent=0 // pred_check
    _
  $region7: #{resnet_block.5} parent=0 // pred_check_branch
    %12 = sbr.rel (0) target = $region9
  $region8: #{resnet_block.5} parent=0 // pred_region
    _
  $region9: #{resnet_block.5} parent=0 // pred_fallthru
    _
  // Predicated region
  $region10: #{resnet_block.5} parent=0 // pred_check
    _
  $region11: #{resnet_block.5} parent=0 // pred_check_branch
    %14 = sbr.rel (0) target = $region13
  $region12: #{resnet_block.5} parent=0 // pred_region
    _
  $region13: #{resnet_block.5} parent=0 // pred_fallthru
    _
  // Predicated region
  $region14: #{resnet_block.5} parent=0 // pred_check
    _
  $region15: #{resnet_block.5} parent=0 // pred_check_branch
    %16 = sbr.rel (0) target = $region17
  $region16: #{resnet_block.5} parent=0 // pred_region
    _
  $region17: #{resnet_block.5} parent=0 // pred_fallthru
    _
  %v17 = vld [vmem:[%s0] sm:$0xf]
  %v18 = vld [vmem:[%s0 + $0x4] sm:$0xf]
  %v19 = vld [vmem:[%s0 + $0x8] sm:$0xf]
  %v20 = vld [vmem:[%s0 + $0xc] sm:$0xf]
  %v21 = vunpack.c.l.bf16 %v17
  %v22 = vunpack.c.l.bf16 %v18
  %v23 = vunpack.c.l.bf16 %v19
  %v24 = vunpack.c.l.bf16 %v20
  %v25 = vld [vmem:[%s1] sm:$0x1]
  %v27 = vlaneseq
  %v28 = vshrl.u32 %v27, 7
  %v29 = vsub.s32 0, %v28
  %v30 = vrot.slane %v25, %v29
  %v32 = vmul.f32 %v21, %v30
  %v33 = vmul.f32 %v22, %v30
  %v34 = vmul.f32 %v23, %v30
  %v35 = vmul.f32 %v24, %v30
  %v36 = vld [vmem:[%s2] sm:$0x1]
  %v38 = vlaneseq
  %v39 = vshrl.u32 %v38, 7
  %v40 = vsub.s32 0, %v39
  %v41 = vrot.slane %v36, %v40
  %v43 = vadd.f32 %v32, %v41
  %v44 = vadd.f32 %v33, %v41
  %v45 = vadd.f32 %v34, %v41
  %v46 = vadd.f32 %v35, %v41
  %v47 = vld [vmem:[%s3] sm:$0xf]
  %v48 = vld [vmem:[%s3 + $0x4] sm:$0xf]
  %v49 = vld [vmem:[%s3 + $0x8] sm:$0xf]
  %v50 = vld [vmem:[%s3 + $0xc] sm:$0xf]
  %v51 = vunpack.c.l.bf16 %v47
  %v52 = vunpack.c.l.bf16 %v48
  %v53 = vunpack.c.l.bf16 %v49
  %v54 = vunpack.c.l.bf16 %v50
  %v55 = vadd.f32 %v43, %v51
  %v56 = vadd.f32 %v44, %v52
  %v57 = vadd.f32 %v45, %v53
  %v58 = vadd.f32 %v46, %v54
  %vm59 = vcmp.ge.f32.partialorder %v55, 0.0
  %vm60 = vcmp.ge.f32.partialorder %v56, 0.0
  %vm61 = vcmp.ge.f32.partialorder %v57, 0.0
  %vm62 = vcmp.ge.f32.partialorder %v58, 0.0
  %v63 = vmul.f32 %v55, 0.0
  %v64 = vmul.f32 %v56, 0.0
  %v65 = vmul.f32 %v57, 0.0
  %v66 = vmul.f32 %v58, 0.0
  %v67 = vsel %vm59, %v55, %v63
  %v68 = vsel %vm60, %v56, %v64
  %v69 = vsel %vm61, %v57, %v65
  %v70 = vsel %vm62, %v58, %v66
  %71 = vst [vmem:[%s4] sm:$0xff] %v67
  %72 = vst [vmem:[%s4 + $0x8] sm:$0xff] %v68
  %73 = vst [vmem:[%s4 + $0x10] sm:$0xff] %v69
  %74 = vst [vmem:[%s4 + $0x18] sm:$0xff] %v70
  // Predicated region
  $region18: #{resnet_block.5} parent=0 // pred_check
    _
  $region19: #{resnet_block.5} parent=0 // pred_check_branch
    %76 = sbr.rel (0) target = $region21
  $region20: #{resnet_block.5} parent=0 // pred_region
    _
  $region21: #{resnet_block.5} parent=0 // pred_fallthru
    _
  // Predicated region
  $region22: #{resnet_block.5} parent=0 // pred_check
    _
  $region23: #{resnet_block.5} parent=0 // pred_check_branch
    %78 = sbr.rel (0) target = $region25
  $region24: #{resnet_block.5} parent=0 // pred_region
    _
  $region25: #{resnet_block.5} parent=0 // pred_fallthru
    _

</llo_original>
